<compile_context>
chip_gen: v7x
topology: tpu7x:2x2x1
jax: 0.10.0
libtpu: 0.0.40
codegen_flags: <defaults>
</compile_context>

<pallas_src>
import functools

import jax
import jax.numpy as jnp
from jax import lax
from jax.experimental import pallas as pl
from jax.experimental.pallas import tpu as pltpu


_EPS = 1e-12  # F.normalize default eps (clamp_min on the norm)


def _round_up(x, m):
    return ((x + m - 1) // m) * m


def _pad2(x, rows, cols):
    pr, pc = rows - x.shape[0], cols - x.shape[1]
    if pr == 0 and pc == 0:
        return x
    return jnp.pad(x, ((0, pr), (0, pc)))


def _vmem_estimate_bytes(tb, dp, hp):
    inputs = 2 * 2 * tb * dp * 4                      # z_a, z_b tiles, double-buffered
    weights = 2 * (dp * hp + hp * dp + hp + dp) * 4   # w1, w2, b1, b2 (2 buffers)
    acts = (tb * hp + 4 * tb * dp) * 4                # h, z_a_n, p_a, temporaries
    out = 2 * 8 * 128 * 4
    return inputs + weights + acts + out


def _choose_block_rows(b, dp, hp, requested, budget_bytes):
    tb = _round_up(min(requested, _round_up(b, 8)), 8)
    while tb > 8 and _vmem_estimate_bytes(tb, dp, hp) > budget_bytes:
        tb = max(8, _round_up(tb // 2, 8))
    return tb


def _byol_loss_kernel(z_a_ref, z_b_ref, w1_ref, b1_ref, w2_ref, b2_ref,
                      part_ref, *, matmul_dtype):
    eps_sq = jnp.float32(_EPS * _EPS)

    z_a = z_a_ref[...].astype(jnp.float32)            # (TB, Dp)
    z_b = z_b_ref[...].astype(jnp.float32)            # (TB, Dp)

    # F.normalize(z_a, dim=1):  x * rsqrt(max(|x|^2, eps^2)) == x / max(|x|, eps)
    za_sq = jnp.sum(z_a * z_a, axis=1, keepdims=True)
    z_a_n = z_a * lax.rsqrt(jnp.maximum(za_sq, eps_sq))

    # Predictor MLP: Linear(D,H) -> ReLU -> Linear(H,D) on the MXU, f32 accumulation.
    h = jnp.dot(z_a_n.astype(matmul_dtype), w1_ref[...].astype(matmul_dtype),
                preferred_element_type=jnp.float32) + b1_ref[...]
    h = jnp.maximum(h, 0.0)
    p_a = jnp.dot(h.astype(matmul_dtype), w2_ref[...].astype(matmul_dtype),
                  preferred_element_type=jnp.float32) + b2_ref[...]

    # Deferred normalization of p_a and z_b, folded into the per-row scalar.
    dot = jnp.sum(p_a * z_b, axis=1, keepdims=True)
    pa_sq = jnp.sum(p_a * p_a, axis=1, keepdims=True)
    zb_sq = jnp.sum(z_b * z_b, axis=1, keepdims=True)
    sim = dot * lax.rsqrt(jnp.maximum(pa_sq, eps_sq)) \
              * lax.rsqrt(jnp.maximum(zb_sq, eps_sq))     # (TB, 1)

    # Per-tile partial sum written into an (8,128)-aligned tile: value at [0,0],
    # zeros elsewhere, so the wrapper can reduce with a plain sum.
    partial = jnp.sum(sim)
    row = lax.broadcasted_iota(jnp.int32, (8, 128), 0)
    lane = lax.broadcasted_iota(jnp.int32, (8, 128), 1)
    part_ref[...] = jnp.where((row == 0) & (lane == 0), partial, jnp.float32(0.0))


def byol_loss(z_a, z_b, w1, b1, w2, b2, *, block_rows=512,
              matmul_dtype=jnp.float32):
    """BYOL loss. z_a, z_b: (B, D); w1: (D, H); b1: (1, H); w2: (H, D); b2: (1, D)."""
    B, D = z_a.shape
    H = w1.shape[1]

    # Lane-dense feature dims (zero padding is semantics preserving).
    Dp = _round_up(D, 128)
    Hp = _round_up(H, 128)

    # Batch tile sized against a v7x-safe VMEM budget.
    vmem_budget = 48 * 1024 * 1024
    TB = _choose_block_rows(B, Dp, Hp, block_rows, vmem_budget)
    Bp = _round_up(B, TB)
    grid_b = Bp // TB

    z_a_p = _pad2(z_a, Bp, Dp)
    z_b_p = _pad2(z_b, Bp, Dp)   # zero-padded rows -> <p_a, z_b> = 0 -> sim = 0 exactly
    w1_p = _pad2(w1, Dp, Hp)
    b1_p = _pad2(b1, 1, Hp)
    w2_p = _pad2(w2, Hp, Dp)
    b2_p = _pad2(b2, 1, Dp)

    est = _vmem_estimate_bytes(TB, Dp, Hp)
    vmem_limit = int(min(max(1.3 * est, 16 * 2**20), 56 * 2**20))

    cost = pl.CostEstimate(
        flops=4 * Bp * Dp * Hp + 12 * Bp * Dp,
        transcendentals=3 * Bp,
        bytes_accessed=4 * (2 * Bp * Dp + Dp * Hp + Hp * Dp + Hp + Dp
                            + grid_b * 8 * 128),
    )

    kernel = functools.partial(_byol_loss_kernel, matmul_dtype=matmul_dtype)

    partials = pl.pallas_call(
        kernel,
        out_shape=jax.ShapeDtypeStruct((grid_b * 8, 128), jnp.float32),
        grid_spec=pltpu.PrefetchScalarGridSpec(
            num_scalar_prefetch=0,
            grid=(grid_b,),
            in_specs=[
                pl.BlockSpec((TB, Dp), lambda i: (i, 0)),   # z_a tile (streamed)
                pl.BlockSpec((TB, Dp), lambda i: (i, 0)),   # z_b tile (streamed)
                pl.BlockSpec((Dp, Hp), lambda i: (0, 0)),   # w1 (resident)
                pl.BlockSpec((1, Hp), lambda i: (0, 0)),    # b1 (resident)
                pl.BlockSpec((Hp, Dp), lambda i: (0, 0)),   # w2 (resident)
                pl.BlockSpec((1, Dp), lambda i: (0, 0)),    # b2 (resident)
            ],
            out_specs=pl.BlockSpec((8, 128), lambda i: (i, 0)),
        ),
        compiler_params=pltpu.CompilerParams(
            dimension_semantics=("parallel",),
            vmem_limit_bytes=vmem_limit,
        ),
        cost_estimate=cost,
    )(z_a_p, z_b_p, w1_p, b1_p, w2_p, b2_p)

    # Tiny cross-tile reduction; divide by the TRUE batch size, not the padded one.
    return 2.0 - 2.0 * jnp.sum(partials) / jnp.float32(B)


def byol_loss_ref(z_a, z_b, w1, b1, w2, b2):
    """Pure-JAX f32 reference mirroring the PyTorch forward."""
    z_a = z_a / jnp.maximum(jnp.linalg.norm(z_a, axis=1, keepdims=True), _EPS)
    z_b = z_b / jnp.maximum(jnp.linalg.norm(z_b, axis=1, keepdims=True), _EPS)
    p_a = jnp.maximum(z_a @ w1 + b1, 0.0) @ w2 + b2
    p_a = p_a / jnp.maximum(jnp.linalg.norm(p_a, axis=1, keepdims=True), _EPS)
    return 2.0 - 2.0 * jnp.mean(jnp.sum(p_a * z_b, axis=1))


def _make_inputs(key, B, D, H):
    k_za, k_zb, k_w1, k_b1, k_w2, k_b2 = jax.random.split(key, 6)
    z_a = jax.random.normal(k_za, (B, D), dtype=jnp.float32)
    z_b = jax.random.normal(k_zb, (B, D), dtype=jnp.float32)
    w1 = jax.random.normal(k_w1, (D, H), dtype=jnp.float32) * (1.0 / jnp.sqrt(D))
    b1 = jax.random.normal(k_b1, (1, H), dtype=jnp.float32) * 0.01
    w2 = jax.random.normal(k_w2, (H, D), dtype=jnp.float32) * (1.0 / jnp.sqrt(H))
    b2 = jax.random.normal(k_b2, (1, D), dtype=jnp.float32) * 0.01
    return z_a, z_b, w1, b1, w2, b2


if __name__ == "__main__":
    B, D, H = 8, 32, 64  # batch, embedding dim, predictor hidden dim
    key = jax.random.PRNGKey(0)

    # Small single-tile case: exact f32 path.
    args = _make_inputs(key, B, D, H)
    loss = jax.block_until_ready(byol_loss(*args))
    ref = byol_loss_ref(*args)
    assert jnp.allclose(loss, ref, atol=1e-5, rtol=1e-5), (loss, ref)

    # Multi-tile case with batch padding (B=300 is not a multiple of the 128-row tile).
    B2 = 300
    args2 = _make_inputs(jax.random.PRNGKey(0), B2, D, H)
    loss2 = jax.block_until_ready(byol_loss(*args2, block_rows=128))
    ref2 = byol_loss_ref(*args2)
    assert jnp.allclose(loss2, ref2, atol=1e-5, rtol=1e-5), (loss2, ref2)

    # bf16 MXU-operand fast path (v6e / v7x): f32 accumulation, relaxed tolerance.
    loss_bf16 = jax.block_until_ready(
        byol_loss(*args2, block_rows=128, matmul_dtype=jnp.bfloat16))
    assert jnp.allclose(loss_bf16, ref2, atol=2e-2, rtol=2e-2), (loss_bf16, ref2)

    print("KERNEL_OK")
</pallas_src>

<mosaic_0001>
module attributes {stable_mosaic.version = 11 : i64} {
  func.func @_byol_loss_kernel(%arg0: i32, %arg1: memref<8x128xf32, #tpu.memory_space<vmem>>, %arg2: memref<8x128xf32, #tpu.memory_space<vmem>>, %arg3: memref<128x128xf32, #tpu.memory_space<vmem>>, %arg4: memref<1x128xf32, #tpu.memory_space<vmem>>, %arg5: memref<128x128xf32, #tpu.memory_space<vmem>>, %arg6: memref<1x128xf32, #tpu.memory_space<vmem>>, %arg7: memref<8x128xf32, #tpu.memory_space<vmem>>) attributes {dimension_semantics = [#tpu.dimension_semantics<parallel>], iteration_bounds = array<i64: 1>, scalar_prefetch = 0 : i64, scratch_operands = 0 : i64, tpu.core_type = #tpu.core_type<tc>, window_params = [{transform_indices = @transform_0, window_bounds = array<i64: 8, 128>}, {transform_indices = @transform_1, window_bounds = array<i64: 8, 128>}, {pipeline_mode = #tpu.pipeline_mode<synchronous>, transform_indices = @transform_2, window_bounds = array<i64: 128, 128>}, {pipeline_mode = #tpu.pipeline_mode<synchronous>, transform_indices = @transform_3, window_bounds = array<i64: 1, 128>}, {pipeline_mode = #tpu.pipeline_mode<synchronous>, transform_indices = @transform_4, window_bounds = array<i64: 128, 128>}, {pipeline_mode = #tpu.pipeline_mode<synchronous>, transform_indices = @transform_5, window_bounds = array<i64: 1, 128>}, {transform_indices = @transform_6, window_bounds = array<i64: 8, 128>}]} {
    %c0 = arith.constant 0 : index
    %c0_0 = arith.constant 0 : index
    %0 = vector.load %arg1[%c0, %c0_0] : memref<8x128xf32, #tpu.memory_space<vmem>>, vector<8x128xf32>
    %c0_1 = arith.constant 0 : index
    %c0_2 = arith.constant 0 : index
    %1 = vector.load %arg2[%c0_1, %c0_2] : memref<8x128xf32, #tpu.memory_space<vmem>>, vector<8x128xf32>
    %2 = arith.mulf %0, %0 : vector<8x128xf32>
    %cst = arith.constant dense<0.000000e+00> : vector<8xf32>
    %3 = vector.multi_reduction <add>, %2, %cst [1] : vector<8x128xf32> to vector<8xf32>
    %4 = vector.shape_cast %3 : vector<8xf32> to vector<8x1xf32>
    %cst_3 = arith.constant 1.000000e-24 : f32
    %5 = vector.broadcast %cst_3 : f32 to vector<8x1xf32>
    %6 = arith.maximumf %4, %5 : vector<8x1xf32>
    %7 = math.rsqrt %6 : vector<8x1xf32>
    %8 = vector.broadcast %7 : vector<8x1xf32> to vector<8x128xf32>
    %9 = arith.mulf %0, %8 : vector<8x128xf32>
    %c0_4 = arith.constant 0 : index
    %c0_5 = arith.constant 0 : index
    %10 = vector.load %arg3[%c0_4, %c0_5] : memref<128x128xf32, #tpu.memory_space<vmem>>, vector<128x128xf32>
    %cst_6 = arith.constant dense<0.000000e+00> : vector<8x128xf32>
    %11 = tpu.matmul %9, %10, %cst_6 {dimension_numbers = #tpu.dot_dimension_numbers<[1], [0], [0], [1], [0, 0, 1, 1], [], []>} : vector<8x128xf32>, vector<128x128xf32>, vector<8x128xf32> -> vector<8x128xf32>
    %c0_7 = arith.constant 0 : index
    %c0_8 = arith.constant 0 : index
    %12 = vector.load %arg4[%c0_7, %c0_8] : memref<1x128xf32, #tpu.memory_space<vmem>>, vector<1x128xf32>
    %13 = vector.broadcast %12 : vector<1x128xf32> to vector<8x128xf32>
    %14 = arith.addf %11, %13 : vector<8x128xf32>
    %cst_9 = arith.constant 0.000000e+00 : f32
    %15 = vector.broadcast %cst_9 : f32 to vector<8x128xf32>
    %16 = arith.maximumf %14, %15 : vector<8x128xf32>
    %c0_10 = arith.constant 0 : index
    %c0_11 = arith.constant 0 : index
    %17 = vector.load %arg5[%c0_10, %c0_11] : memref<128x128xf32, #tpu.memory_space<vmem>>, vector<128x128xf32>
    %cst_12 = arith.constant dense<0.000000e+00> : vector<8x128xf32>
    %18 = tpu.matmul %16, %17, %cst_12 {dimension_numbers = #tpu.dot_dimension_numbers<[1], [0], [0], [1], [0, 0, 1, 1], [], []>} : vector<8x128xf32>, vector<128x128xf32>, vector<8x128xf32> -> vector<8x128xf32>
    %c0_13 = arith.constant 0 : index
    %c0_14 = arith.constant 0 : index
    %19 = vector.load %arg6[%c0_13, %c0_14] : memref<1x128xf32, #tpu.memory_space<vmem>>, vector<1x128xf32>
    %20 = vector.broadcast %19 : vector<1x128xf32> to vector<8x128xf32>
    %21 = arith.addf %18, %20 : vector<8x128xf32>
    %22 = arith.mulf %21, %1 : vector<8x128xf32>
    %cst_15 = arith.constant dense<0.000000e+00> : vector<8xf32>
    %23 = vector.multi_reduction <add>, %22, %cst_15 [1] : vector<8x128xf32> to vector<8xf32>
    %24 = vector.shape_cast %23 : vector<8xf32> to vector<8x1xf32>
    %25 = arith.mulf %21, %21 : vector<8x128xf32>
    %cst_16 = arith.constant dense<0.000000e+00> : vector<8xf32>
    %26 = vector.multi_reduction <add>, %25, %cst_16 [1] : vector<8x128xf32> to vector<8xf32>
    %27 = vector.shape_cast %26 : vector<8xf32> to vector<8x1xf32>
    %28 = arith.mulf %1, %1 : vector<8x128xf32>
    %cst_17 = arith.constant dense<0.000000e+00> : vector<8xf32>
    %29 = vector.multi_reduction <add>, %28, %cst_17 [1] : vector<8x128xf32> to vector<8xf32>
    %30 = vector.shape_cast %29 : vector<8xf32> to vector<8x1xf32>
    %cst_18 = arith.constant 1.000000e-24 : f32
    %31 = vector.broadcast %cst_18 : f32 to vector<8x1xf32>
    %32 = arith.maximumf %27, %31 : vector<8x1xf32>
    %33 = math.rsqrt %32 : vector<8x1xf32>
    %34 = arith.mulf %24, %33 : vector<8x1xf32>
    %cst_19 = arith.constant 1.000000e-24 : f32
    %35 = vector.broadcast %cst_19 : f32 to vector<8x1xf32>
    %36 = arith.maximumf %30, %35 : vector<8x1xf32>
    %37 = math.rsqrt %36 : vector<8x1xf32>
    %38 = arith.mulf %34, %37 : vector<8x1xf32>
    %39 = vector.shape_cast %38 : vector<8x1xf32> to vector<1x8x1xf32>
    %cst_20 = arith.constant dense<0.000000e+00> : vector<1xf32>
    %40 = vector.multi_reduction <add>, %39, %cst_20 [1, 2] : vector<1x8x1xf32> to vector<1xf32>
    %41 = vector.shape_cast %40 : vector<1xf32> to vector<1x1x1xf32>
    %42 = vector.extract %41[0, 0, 0] : f32 from vector<1x1x1xf32>
    %43 = tpu.iota {dimensions = array<i32: 0>} : vector<8x128xi32>
    %44 = tpu.iota {dimensions = array<i32: 1>} : vector<8x128xi32>
    %c0_i32 = arith.constant 0 : i32
    %45 = vector.broadcast %c0_i32 : i32 to vector<8x128xi32>
    %46 = arith.cmpi eq, %43, %45 : vector<8x128xi32>
    %c0_i32_21 = arith.constant 0 : i32
    %47 = vector.broadcast %c0_i32_21 : i32 to vector<8x128xi32>
    %48 = arith.cmpi eq, %44, %47 : vector<8x128xi32>
    %49 = arith.andi %46, %48 : vector<8x128xi1>
    %cst_22 = arith.constant 0.000000e+00 : f32
    %50 = vector.broadcast %42 : f32 to vector<8x128xf32>
    %51 = vector.broadcast %cst_22 : f32 to vector<8x128xf32>
    %52 = arith.select %49, %50, %51 : vector<8x128xi1>, vector<8x128xf32>
    %c0_23 = arith.constant 0 : index
    %c0_24 = arith.constant 0 : index
    %53 = vector.load %arg7[%c0_23, %c0_24] : memref<8x128xf32, #tpu.memory_space<vmem>>, vector<8x128xf32>
    tpu.vector_store %arg7[%c0_23, %c0_24], %52 {strides = array<i32>} : memref<8x128xf32, #tpu.memory_space<vmem>>, vector<8x128xf32>,
    return
  }
  func.func @transform_0(%arg0: i32) -> (i32, i32) {
    %c0_i32 = arith.constant 0 : i32
    %c0_i32_0 = arith.constant 0 : i32
    return %arg0, %c0_i32 : i32, i32
  }
  func.func @transform_1(%arg0: i32) -> (i32, i32) {
    %c0_i32 = arith.constant 0 : i32
    %c0_i32_0 = arith.constant 0 : i32
    return %arg0, %c0_i32 : i32, i32
  }
  func.func @transform_2(%arg0: i32) -> (i32, i32) {
    %c0_i32 = arith.constant 0 : i32
    %c0_i32_0 = arith.constant 0 : i32
    %c0_i32_1 = arith.constant 0 : i32
    return %c0_i32, %c0_i32_0 : i32, i32
  }
  func.func @transform_3(%arg0: i32) -> (i32, i32) {
    %c0_i32 = arith.constant 0 : i32
    %c0_i32_0 = arith.constant 0 : i32
    %c0_i32_1 = arith.constant 0 : i32
    return %c0_i32, %c0_i32_0 : i32, i32
  }
  func.func @transform_4(%arg0: i32) -> (i32, i32) {
    %c0_i32 = arith.constant 0 : i32
    %c0_i32_0 = arith.constant 0 : i32
    %c0_i32_1 = arith.constant 0 : i32
    return %c0_i32, %c0_i32_0 : i32, i32
  }
  func.func @transform_5(%arg0: i32) -> (i32, i32) {
    %c0_i32 = arith.constant 0 : i32
    %c0_i32_0 = arith.constant 0 : i32
    %c0_i32_1 = arith.constant 0 : i32
    return %c0_i32, %c0_i32_0 : i32, i32
  }
  func.func @transform_6(%arg0: i32) -> (i32, i32) {
    %c0_i32 = arith.constant 0 : i32
    %c0_i32_0 = arith.constant 0 : i32
    return %arg0, %c0_i32 : i32, i32
  }
}

</mosaic_0001>

<llo_original>
// kernel: tpu_custom_call.1
$region0: #{tpu_custom_call.1}
  #allocation0 [shape = 'u32[]', space=smem, size = 0x4, offset = 0x4, fixed_abs, tag = 'smem constant byte address 0x4 - core index']
  #allocation1 [shape = 'u32[144,128]{1,0:T(1,128)}', space=vmem, size = 0x12000, scoped, tag = 'internal scratch']
  %s0 = inlined_call_operand.hbm [shape: f32[8,128], index: 0, kind: input, shape index: {}]
  %s1 = inlined_call_operand.hbm [shape: f32[8,128], index: 1, kind: input, shape index: {}]
  %s2 = inlined_call_operand.hbm [shape: f32[128,128], index: 2, kind: input, shape index: {}]
  %s3 = inlined_call_operand.vmem [shape: f32[1,128], index: 3, kind: input, shape index: {}]
  %s4 = inlined_call_operand.hbm [shape: f32[128,128], index: 4, kind: input, shape index: {}]
  %s5 = inlined_call_operand.vmem [shape: f32[1,128], index: 5, kind: input, shape index: {}]
  %s6 = inlined_call_operand.hbm [shape: f32[8,128], index: 6, kind: output, shape index: {}]
  %s7 = sld [smem:[#allocation0]]
  $region50: #{tpu_custom_call.1} parent=0
    _
  %s9 = ssub.s32 1, %s7
  %s10 = scalar_select 0, %s9, %s7
  $region1: #{tpu_custom_call.1} parent=0
    #allocation2 [shape = 'u8[4096]{0}', space=vmem, size = 0x1000, scoped, tag = 'input window, operand 0, single buffered']
    #allocation3 [shape = 's32[1]{0}', space=sflag, size = 0x4, scoped, tag = 'scoped memory for tpu_custom_call.1']
    #allocation4 [shape = 's32[1]{0}', space=sflag, size = 0x4, scoped, tag = 'scoped memory for tpu_custom_call.1']
    #allocation5 [shape = 'u8[4096]{0}', space=vmem, size = 0x1000, scoped, tag = 'input window, operand 1, single buffered']
    #allocation6 [shape = 's32[1]{0}', space=sflag, size = 0x4, scoped, tag = 'scoped memory for tpu_custom_call.1']
    #allocation7 [shape = 'u8[65536]{0}', space=vmem, size = 0x10000, scoped, tag = 'input window, operand 2, single buffered']
    #allocation8 [shape = 'u8[65536]{0}', space=vmem, size = 0x10000, scoped, tag = 'input window, operand 4, single buffered']
    #allocation9 [shape = 's32[1]{0}', space=sflag, size = 0x4, scoped, tag = 'scoped memory for tpu_custom_call.1']
    #allocation10 [shape = 'u8[4096]{0}', space=vmem, size = 0x1000, scoped, tag = 'output window, operand 0, single buffered']
    %11 = vsyncpa [#allocation3], 0
    %12 = vsyncpa [#allocation6], 0
    %13 = vsyncpa [#allocation9], 0
    %14 = vsyncpa [#allocation4], 0
    // Predicated region
    $region2: #{tpu_custom_call.1} parent=1 // pred_check
      _
    $region3: #{tpu_custom_call.1} parent=1 // pred_check_branch
      %16 = sbr.rel (0) target = $region5
    $region4: #{tpu_custom_call.1} parent=1 // pred_region
      %s18 = ssub.s32 128, 128
      %19 = vsyncadd [#allocation3], %s18
      %s21 = sshll.u32 [#allocation2], 4
      %s22 = int_to_ptr.vmem [resolvable:$true] %s21
      %24 = dma.hbm_to_vmem [thread:$0]  %s0, 128, %s22, [#allocation3]
    $region5: #{tpu_custom_call.1} parent=1 // pred_fallthru
      _
    // Predicated region
    $region6: #{tpu_custom_call.1} parent=1 // pred_check
      _
    $region7: #{tpu_custom_call.1} parent=1 // pred_check_branch
      %26 = sbr.rel (0) target = $region9
    $region8: #{tpu_custom_call.1} parent=1 // pred_region
      %s28 = ssub.s32 128, 128
      %29 = vsyncadd [#allocation6], %s28
      %s31 = sshll.u32 [#allocation5], 4
      %s32 = int_to_ptr.vmem [resolvable:$true] %s31
      %34 = dma.hbm_to_vmem [thread:$0]  %s1, 128, %s32, [#allocation6]
    $region9: #{tpu_custom_call.1} parent=1 // pred_fallthru
      _
    // Predicated region
    $region10: #{tpu_custom_call.1} parent=1 // pred_check
      _
    $region11: #{tpu_custom_call.1} parent=1 // pred_check_branch
      %36 = sbr.rel (0) target = $region13
    $region12: #{tpu_custom_call.1} parent=1 // pred_region
      %s38 = ssub.s32 2048, 2048
      %39 = vsyncadd [#allocation6], %s38
      %s40 = sshll.u32 [#allocation7], 4
      %s41 = int_to_ptr.vmem [resolvable:$true] %s40
      %46 = dma.hbm_to_vmem [thread:$0]  %s2, 2048, %s41, [#allocation6], 128, 128, 8
    $region13: #{tpu_custom_call.1} parent=1 // pred_fallthru
      _
    // Predicated region
    $region14: #{tpu_custom_call.1} parent=1 // pred_check
      _
    $region15: #{tpu_custom_call.1} parent=1 // pred_check_branch
      %48 = sbr.rel (0) target = $region17
    $region16: #{tpu_custom_call.1} parent=1 // pred_region
      _
    $region17: #{tpu_custom_call.1} parent=1 // pred_fallthru
      _
    // Predicated region
    $region18: #{tpu_custom_call.1} parent=1 // pred_check
      _
    $region19: #{tpu_custom_call.1} parent=1 // pred_check_branch
      %50 = sbr.rel (0) target = $region21
    $region20: #{tpu_custom_call.1} parent=1 // pred_region
      %s52 = ssub.s32 2048, 2048
      %53 = vsyncadd [#allocation9], %s52
      %s54 = sshll.u32 [#allocation8], 4
      %s55 = int_to_ptr.vmem [resolvable:$true] %s54
      %60 = dma.hbm_to_vmem [thread:$0]  %s4, 2048, %s55, [#allocation9], 128, 128, 8
    $region21: #{tpu_custom_call.1} parent=1 // pred_fallthru
      _
    // Predicated region
    $region22: #{tpu_custom_call.1} parent=1 // pred_check
      _
    $region23: #{tpu_custom_call.1} parent=1 // pred_check_branch
      %62 = sbr.rel (0) target = $region25
    $region24: #{tpu_custom_call.1} parent=1 // pred_region
      _
    $region25: #{tpu_custom_call.1} parent=1 // pred_fallthru
      _
    // Predicated region
    $region26: #{tpu_custom_call.1} parent=1 // pred_check
      _
    $region27: #{tpu_custom_call.1} parent=1 // pred_check_branch
      %64 = sbr.rel (0) target = $region29
    $region28: #{tpu_custom_call.1} parent=1 // pred_region
      %65 = dma.done [#allocation3], 128
    $region29: #{tpu_custom_call.1} parent=1 // pred_fallthru
      _
    // Predicated region
    $region30: #{tpu_custom_call.1} parent=1 // pred_check
      _
    $region31: #{tpu_custom_call.1} parent=1 // pred_check_branch
      %67 = sbr.rel (0) target = $region33
    $region32: #{tpu_custom_call.1} parent=1 // pred_region
      %68 = dma.done [#allocation6], 128
    $region33: #{tpu_custom_call.1} parent=1 // pred_fallthru
      _
    // Predicated region
    $region34: #{tpu_custom_call.1} parent=1 // pred_check
      _
    $region35: #{tpu_custom_call.1} parent=1 // pred_check_branch
      %70 = sbr.rel (0) target = $region37
    $region36: #{tpu_custom_call.1} parent=1 // pred_region
      %71 = dma.done [#allocation6], 2048
    $region37: #{tpu_custom_call.1} parent=1 // pred_fallthru
      _
    // Predicated region
    $region38: #{tpu_custom_call.1} parent=1 // pred_check
      _
    $region39: #{tpu_custom_call.1} parent=1 // pred_check_branch
      %73 = sbr.rel (0) target = $region41
    $region40: #{tpu_custom_call.1} parent=1 // pred_region
      %74 = dma.done [#allocation9], 2048
    $region41: #{tpu_custom_call.1} parent=1 // pred_fallthru
      _
    %v75 = vld [vmem:[#allocation2] sm:$0xff]
    %v76 = vld [vmem:[#allocation5] sm:$0xff]
    %v77 = vmul.f32 %v75, %v75
    %78 = vadd.xlane.f32.xlu0 %v77
    %v79 = vpop.xlane.xlu0 %78
    %v80 = vmax.f32 %v79, 1e-24
    %v81 = vrsqrt.pop %v80
    %v82 = vmul.f32 %v75, %v81
    %v83 = vld [vmem:[#allocation7] sm:$0xff]
    %v84 = vld [vmem:[#allocation7 + $0x8] sm:$0xff]
    %v85 = vld [vmem:[#allocation7 + $0x10] sm:$0xff]
    %v86 = vld [vmem:[#allocation7 + $0x18] sm:$0xff]
    %v87 = vld [vmem:[#allocation7 + $0x20] sm:$0xff]
    %v88 = vld [vmem:[#allocation7 + $0x28] sm:$0xff]
    %v89 = vld [vmem:[#allocation7 + $0x30] sm:$0xff]
    %v90 = vld [vmem:[#allocation7 + $0x38] sm:$0xff]
    %v91 = vld [vmem:[#allocation7 + $0x40] sm:$0xff]
    %v92 = vld [vmem:[#allocation7 + $0x48] sm:$0xff]
    %v93 = vld [vmem:[#allocation7 + $0x50] sm:$0xff]
    %v94 = vld [vmem:[#allocation7 + $0x58] sm:$0xff]
    %v95 = vld [vmem:[#allocation7 + $0x60] sm:$0xff]
    %v96 = vld [vmem:[#allocation7 + $0x68] sm:$0xff]
    %v97 = vld [vmem:[#allocation7 + $0x70] sm:$0xff]
    %v98 = vld [vmem:[#allocation7 + $0x78] sm:$0xff]
    %v99 = vld [vmem:[%s3] sm:$0x1]
    %v101 = vlaneseq
    %v102 = vshrl.u32 %v101, 7
    %v103 = vsub.s32 0, %v102
    %v104 = vrot.slane %v99, %v103
    %106 = vmatprep.subr.mxu0 0.0
    %107 = vmatpush1.msra.mxu0 %v83
    %108 = vmatprep.subr.mxu0 0.0
    %109 = vmatpush1.msra.mxu0 %v84
    %110 = vmatprep.subr.mxu0 0.0
    %111 = vmatpush1.msra.mxu0 %v85
    %112 = vmatprep.subr.mxu0 0.0
    %113 = vmatpush1.msra.mxu0 %v86
    %114 = vmatprep.subr.mxu0 0.0
    %115 = vmatpush1.msra.mxu0 %v87
    %116 = vmatprep.subr.mxu0 0.0
    %117 = vmatpush1.msra.mxu0 %v88
    %118 = vmatprep.subr.mxu0 0.0
    %119 = vmatpush1.msra.mxu0 %v89
    %120 = vmatprep.subr.mxu0 0.0
    %121 = vmatpush1.msra.mxu0 %v90
    %122 = vmatprep.subr.mxu0 0.0
    %123 = vmatpush1.msra.mxu0 %v91
    %124 = vmatprep.subr.mxu0 0.0
    %125 = vmatpush1.msra.mxu0 %v92
    %126 = vmatprep.subr.mxu0 0.0
    %127 = vmatpush1.msra.mxu0 %v93
    %128 = vmatprep.subr.mxu0 0.0
    %129 = vmatpush1.msra.mxu0 %v94
    %130 = vmatprep.subr.mxu0 0.0
    %131 = vmatpush1.msra.mxu0 %v95
    %132 = vmatprep.subr.mxu0 0.0
    %133 = vmatpush1.msra.mxu0 %v96
    %134 = vmatprep.subr.mxu0 0.0
    %135 = vmatpush1.msra.mxu0 %v97
    %136 = vmatprep.subr.mxu0 0.0
    %137 = vmatpush1.msra.mxu0 %v98
    %138 = vmatprep.subr.mxu0 0.0
    %139 = vmatpush1.msra.mxu0 0.0
    %140 = vmatprep.subr.mxu0 0.0
    %141 = vmatpush1.msra.mxu0 0.0
    %142 = vmatprep.subr.mxu0 0.0
    %143 = vmatpush1.msra.mxu0 0.0
    %144 = vmatprep.subr.mxu0 0.0
    %145 = vmatpush1.msra.mxu0 0.0
    %146 = vmatprep.subr.mxu0 0.0
    %147 = vmatpush1.msra.mxu0 0.0
    %148 = vmatprep.subr.mxu0 0.0
    %149 = vmatpush1.msra.mxu0 0.0
    %150 = vmatprep.subr.mxu0 0.0
    %151 = vmatpush1.msra.mxu0 0.0
    %152 = vmatprep.subr.mxu0 0.0
    %153 = vmatpush1.msra.mxu0 0.0
    %154 = vmatprep.subr.mxu0 0.0
    %155 = vmatpush1.msra.mxu0 0.0
    %156 = vmatprep.subr.mxu0 0.0
    %157 = vmatpush1.msra.mxu0 0.0
    %158 = vmatprep.subr.mxu0 0.0
    %159 = vmatpush1.msra.mxu0 0.0
    %160 = vmatprep.subr.mxu0 0.0
    %161 = vmatpush1.msra.mxu0 0.0
    %162 = vmatprep.subr.mxu0 0.0
    %163 = vmatpush1.msra.mxu0 0.0
    %164 = vmatprep.subr.mxu0 0.0
    %165 = vmatpush1.msra.mxu0 0.0
    %166 = vmatprep.subr.mxu0 0.0
    %167 = vmatpush1.msra.mxu0 0.0
    %168 = vmatprep.subr.mxu0 0.0
    %169 = vmatpush1.msra.mxu0 0.0
    %170 = vmatprep.mubr.f32.mxu0 0.0
    %171 = vmatmul.mubr.f32.gmra.mrb[0].mxu0 %v82
    %v172 = vpop.f32.mrb[0].mxu0
    %v173 = vadd.f32 %v104, %v172
    %v174 = vpop.f32.mrb[0].mxu0
    %175 = vdwg.mxu0
    %v176 = vmax.f32 %v173, 0.0
    %v177 = vld [vmem:[#allocation8] sm:$0xff]
    %v178 = vld [vmem:[#allocation8 + $0x8] sm:$0xff]
    %v179 = vld [vmem:[#allocation8 + $0x10] sm:$0xff]
    %v180 = vld [vmem:[#allocation8 + $0x18] sm:$0xff]
    %v181 = vld [vmem:[#allocation8 + $0x20] sm:$0xff]
    %v182 = vld [vmem:[#allocation8 + $0x28] sm:$0xff]
    %v183 = vld [vmem:[#allocation8 + $0x30] sm:$0xff]
    %v184 = vld [vmem:[#allocation8 + $0x38] sm:$0xff]
    %v185 = vld [vmem:[#allocation8 + $0x40] sm:$0xff]
    %v186 = vld [vmem:[#allocation8 + $0x48] sm:$0xff]
    %v187 = vld [vmem:[#allocation8 + $0x50] sm:$0xff]
    %v188 = vld [vmem:[#allocation8 + $0x58] sm:$0xff]
    %v189 = vld [vmem:[#allocation8 + $0x60] sm:$0xff]
    %v190 = vld [vmem:[#allocation8 + $0x68] sm:$0xff]
    %v191 = vld [vmem:[#allocation8 + $0x70] sm:$0xff]
    %v192 = vld [vmem:[#allocation8 + $0x78] sm:$0xff]
    %v193 = vld [vmem:[%s5] sm:$0x1]
    %v195 = vlaneseq
    %v196 = vshrl.u32 %v195, 7
    %v197 = vsub.s32 0, %v196
    %v198 = vrot.slane %v193, %v197
    %200 = vmatprep.subr.mxu0 0.0
    %201 = vmatpush1.msra.mxu0 %v177
    %202 = vmatprep.subr.mxu0 0.0
    %203 = vmatpush1.msra.mxu0 %v178
    %204 = vmatprep.subr.mxu0 0.0
    %205 = vmatpush1.msra.mxu0 %v179
    %206 = vmatprep.subr.mxu0 0.0
    %207 = vmatpush1.msra.mxu0 %v180
    %208 = vmatprep.subr.mxu0 0.0
    %209 = vmatpush1.msra.mxu0 %v181
    %210 = vmatprep.subr.mxu0 0.0
    %211 = vmatpush1.msra.mxu0 %v182
    %212 = vmatprep.subr.mxu0 0.0
    %213 = vmatpush1.msra.mxu0 %v183
    %214 = vmatprep.subr.mxu0 0.0
    %215 = vmatpush1.msra.mxu0 %v184
    %216 = vmatprep.subr.mxu0 0.0
    %217 = vmatpush1.msra.mxu0 %v185
    %218 = vmatprep.subr.mxu0 0.0
    %219 = vmatpush1.msra.mxu0 %v186
    %220 = vmatprep.subr.mxu0 0.0
    %221 = vmatpush1.msra.mxu0 %v187
    %222 = vmatprep.subr.mxu0 0.0
    %223 = vmatpush1.msra.mxu0 %v188
    %224 = vmatprep.subr.mxu0 0.0
    %225 = vmatpush1.msra.mxu0 %v189
    %226 = vmatprep.subr.mxu0 0.0
    %227 = vmatpush1.msra.mxu0 %v190
    %228 = vmatprep.subr.mxu0 0.0
    %229 = vmatpush1.msra.mxu0 %v191
    %230 = vmatprep.subr.mxu0 0.0
    %231 = vmatpush1.msra.mxu0 %v192
    %232 = vmatprep.subr.mxu0 0.0
    %233 = vmatpush1.msra.mxu0 0.0
    %234 = vmatprep.subr.mxu0 0.0
    %235 = vmatpush1.msra.mxu0 0.0
    %236 = vmatprep.subr.mxu0 0.0
    %237 = vmatpush1.msra.mxu0 0.0
    %238 = vmatprep.subr.mxu0 0.0
    %239 = vmatpush1.msra.mxu0 0.0
    %240 = vmatprep.subr.mxu0 0.0
    %241 = vmatpush1.msra.mxu0 0.0
    %242 = vmatprep.subr.mxu0 0.0
    %243 = vmatpush1.msra.mxu0 0.0
    %244 = vmatprep.subr.mxu0 0.0
    %245 = vmatpush1.msra.mxu0 0.0
    %246 = vmatprep.subr.mxu0 0.0
    %247 = vmatpush1.msra.mxu0 0.0
    %248 = vmatprep.subr.mxu0 0.0
    %249 = vmatpush1.msra.mxu0 0.0
    %250 = vmatprep.subr.mxu0 0.0
    %251 = vmatpush1.msra.mxu0 0.0
    %252 = vmatprep.subr.mxu0 0.0
    %253 = vmatpush1.msra.mxu0 0.0
    %254 = vmatprep.subr.mxu0 0.0
    %255 = vmatpush1.msra.mxu0 0.0
    %256 = vmatprep.subr.mxu0 0.0
    %257 = vmatpush1.msra.mxu0 0.0
    %258 = vmatprep.subr.mxu0 0.0
    %259 = vmatpush1.msra.mxu0 0.0
    %260 = vmatprep.subr.mxu0 0.0
    %261 = vmatpush1.msra.mxu0 0.0
    %262 = vmatprep.subr.mxu0 0.0
    %263 = vmatpush1.msra.mxu0 0.0
    %264 = vmatprep.mubr.f32.mxu0 0.0
    %265 = vmatmul.mubr.f32.gmra.mrb[0].mxu0 %v176
    %v266 = vpop.f32.mrb[0].mxu0
    %v267 = vadd.f32 %v198, %v266
    %v268 = vpop.f32.mrb[0].mxu0
    %269 = vdwg.mxu0
    %v270 = vmul.f32 %v267, %v76
    %271 = vadd.xlane.f32.xlu0 %v270
    %v272 = vpop.xlane.xlu0 %271
    %v273 = vmul.f32 %v267, %v267
    %274 = vadd.xlane.f32.xlu0 %v273
    %v275 = vpop.xlane.xlu0 %274
    %v276 = vmul.f32 %v76, %v76
    %277 = vadd.xlane.f32.xlu0 %v276
    %v278 = vpop.xlane.xlu0 %277
    %v279 = vmax.f32 %v275, 1e-24
    %v280 = vrsqrt.pop %v279
    %v281 = vmul.f32 %v272, %v280
    %v282 = vmax.f32 %v278, 1e-24
    %v283 = vrsqrt.pop %v282
    %v284 = vmul.f32 %v281, %v283
    %vm285 = vcmask 7168
    %v286 = vsel %vm285, %v284, 0.0
    %287 = vadd.xlane.f32.xlu0 %v286
    %v288 = vpop.xlane.xlu0 %287
    %v289 = vrot.slane %v288, 4
    %v290 = vadd.f32 %v288, %v289
    %v291 = vrot.slane %v290, 2
    %v292 = vadd.f32 %v290, %v291
    %v293 = vrot.slane %v292, 1
    %v294 = vadd.f32 %v292, %v293
    %s295 = vtos %v294
    %v296 = vlaneseq
    %v297 = vshrl.u32 %v296, 7
    %v298 = vlaneseq
    %v299 = vand.u32 %v298, 127
    %vm300 = vcmp.eq.s32.totalorder %v297, 0
    %vm301 = vcmp.eq.s32.totalorder %v299, 0
    %vm302 = vmand %vm300, %vm301
    %v303 = vstv %s295
    %v304 = vsel %vm302, %v303, 0.0
    %305 = vst [vmem:[#allocation10] sm:$0xff] %v304
    // Predicated region
    $region42: #{tpu_custom_call.1} parent=1 // pred_check
      _
    $region43: #{tpu_custom_call.1} parent=1 // pred_check_branch
      %307 = sbr.rel (0) target = $region45
    $region44: #{tpu_custom_call.1} parent=1 // pred_region
      %s309 = ssub.s32 128, 128
      %310 = vsyncadd [#allocation4], %s309
      %s312 = sshll.u32 [#allocation10], 4
      %s313 = int_to_ptr.vmem [resolvable:$true] %s312
      %315 = dma.vmem_to_hbm [thread:$0]  %s313, 128, %s6, [#allocation4]
    $region45: #{tpu_custom_call.1} parent=1 // pred_fallthru
      _
    // Predicated region
    $region46: #{tpu_custom_call.1} parent=1 // pred_check
      _
    $region47: #{tpu_custom_call.1} parent=1 // pred_check_branch
      %317 = sbr.rel (0) target = $region49
    $region48: #{tpu_custom_call.1} parent=1 // pred_region
      %318 = dma.done [#allocation4], 128
    $region49: #{tpu_custom_call.1} parent=1 // pred_fallthru
      _
    %319 = vsyncpa [#allocation3], 1
    %320 = vsyncpa [#allocation6], 1
    %321 = vsyncpa [#allocation9], 1
    %322 = vsyncpa [#allocation4], 1

</llo_original>
